<compile_context>
chip_gen: v5e
topology: v5e:2x2
jax: 0.10.0
libtpu: 0.0.40
codegen_flags: <defaults>
</compile_context>

<pallas_src>
import functools

import jax
import jax.numpy as jnp
from jax import lax
from jax.experimental import pallas as pl
from jax.experimental.pallas import tpu as pltpu

EPS = 1e-8  # matches torch.nn.CosineSimilarity eps default

_LANE = 128
_SUB = 8
_VMEM_BUDGET = 40 * 1024 * 1024        # conservative for v7x's 64 MiB/TC
_STEP_TARGET_BYTES = 2 * 1024 * 1024   # aim for >= ~2 MiB HBM traffic per step
_MAX_TILE_B = 8192
_FUSED_TABLE_BYTES_CAP = 8 * 1024 * 1024   # table must fit comfortably in VMEM
_FUSED_MAX_INDICES = 128 * 1024            # flat index array lives in SMEM


def _cdiv(a: int, b: int) -> int:
    return -(-a // b)


def _round_up(x: int, m: int) -> int:
    return _cdiv(x, m) * m


def _normalize_rows(x):
    """x / max(||x||, eps) via EUP rsqrt (no divide)."""
    ssq = jnp.sum(x * x, axis=-1, keepdims=True)
    return x * lax.rsqrt(jnp.maximum(ssq, EPS * EPS))


# --------------------------------------------------------------------------- #
# Kernels
# --------------------------------------------------------------------------- #
def _fused_gather_sim_kernel(idx_ref, table_ref, protoT_ref, out_ref, gather_ref):
    """out[b, p] = 1 + cos(table[idx[b]], proto[p]) for one batch tile.

    idx_ref: SMEM int32 [grid*tile_b] (scalar-prefetched flat indices)
    table_ref: VMEM-resident [N, D] f32 (single-buffered)
    protoT_ref: VMEM-resident [D, P] f32, rows pre-normalized (single-buffered)
    gather_ref: VMEM scratch [tile_b, D] f32
    """
    tile_b = gather_ref.shape[0]
    n_objects = table_ref.shape[0]
    base = pl.program_id(0) * tile_b

    def gather_row(r, carry):
        idx = idx_ref[base + r]
        # Clamp like jnp.take's default 'clip' mode; torch.nn.Embedding would
        # raise on OOB — clamping also prevents an OOB VMEM read here.
        idx = jnp.minimum(jnp.maximum(idx, 0), n_objects - 1)
        gather_ref[pl.ds(r, 1), :] = table_ref[pl.ds(idx, 1), :]
        return carry

    lax.fori_loop(0, tile_b, gather_row, 0)

    xn = _normalize_rows(gather_ref[...])
    sim = jnp.dot(xn, protoT_ref[...], preferred_element_type=jnp.float32)
    out_ref[...] = 1.0 + sim           # 'shifted' cosine


def _sim_kernel(emb_ref, protoT_ref, out_ref):
    """Fallback: embeddings already gathered (XLA); similarity only."""
    xn = _normalize_rows(emb_ref[...])
    sim = jnp.dot(xn, protoT_ref[...], preferred_element_type=jnp.float32)
    out_ref[...] = 1.0 + sim


# --------------------------------------------------------------------------- #
# Tiling / VMEM heuristics
# --------------------------------------------------------------------------- #
def _choose_tile_b(B: int, D: int, P: int, resident_bytes: int, fused: bool) -> int:
    d_pad = _round_up(D, _LANE)
    p_pad = _round_up(P, _LANE)
    # VMEM bytes per batch row in the pipeline (lane-padded layout):
    #   fused: gather scratch (x1) + double-buffered out
    #   fallback: double-buffered emb tile + double-buffered out
    per_row = ((d_pad + 2 * p_pad) if fused else (2 * d_pad + 2 * p_pad)) * 4
    avail = max(_VMEM_BUDGET - resident_bytes, 1 << 20)
    cap_vmem = max(_SUB, (avail // per_row) // _SUB * _SUB)
    # HBM bytes per batch row per step (fused path never re-reads the table).
    hbm_per_row = (P if fused else (D + P)) * 4
    target = _round_up(_cdiv(_STEP_TARGET_BYTES, hbm_per_row), _SUB)
    tile_b = min(max(target, 256), cap_vmem, _MAX_TILE_B)
    if B <= tile_b:
        return B                        # single block covering the full batch
    # Keep >= 2 grid steps so the "parallel" axis gives both v7x TCs work.
    tile_b = min(tile_b, _round_up(_cdiv(B, 2), _SUB))
    return max(_SUB, tile_b)


def _vmem_limit(tile_b: int, D: int, P: int, resident_bytes: int, fused: bool) -> int:
    rows = _round_up(tile_b, _SUB)
    d_pad = _round_up(D, _LANE)
    p_pad = _round_up(P, _LANE)
    act = rows * d_pad * 4 * (1 if fused else 2)
    out = 2 * rows * p_pad * 4
    need = resident_bytes + act + out + (4 << 20)   # slack for compiler scratch
    # >= 32 MiB (v5e's default scoped limit is only 16), <= 56 MiB (v7x has
    # 64 MiB physical per TC; v5e/v6e have 128 so this is always safe).
    return int(min(max(need, 32 << 20), 56 << 20))


# --------------------------------------------------------------------------- #
# Forward pass
# --------------------------------------------------------------------------- #
@functools.partial(jax.jit, static_argnames=("use_fused_gather",))
def prototype_embedding_forward(o_idxs: jax.Array,
                                embedding_table: jax.Array,
                                prototypes: jax.Array,
                                *,
                                use_fused_gather: bool | None = None) -> jax.Array:
    """PrototypeEmbedding.forward (defaults: shifted cosine, no weight matrix, k=-1).

    o_idxs: int [batch] or [batch, n_neg_p_1]
    embedding_table: [n_objects, embedding_dim]
    prototypes: [n_prototypes, embedding_dim]
    returns: [*o_idxs.shape, n_prototypes] float32
    """
    assert o_idxs.ndim in (1, 2), f"Object indexes have bad shape {o_idxs.shape}"
    lead_shape = o_idxs.shape
    flat_idxs = o_idxs.reshape(-1).astype(jnp.int32)
    B = flat_idxs.shape[0]
    N, D = embedding_table.shape
    P, D2 = prototypes.shape
    assert D == D2, (embedding_table.shape, prototypes.shape)

    # One-time layout work (per call, not per tile): normalize prototype rows
    # and transpose to [D, P] so the in-kernel contraction feeds the MXU
    # directly. Compute dtype is explicit f32 (matches the torch module).
    # TODO(synk): optional bf16 operand/output variant would halve HBM traffic.
    protoT = _normalize_rows(prototypes.astype(jnp.float32)).T      # [D, P]

    protoT_bytes = _round_up(D, _SUB) * _round_up(P, _LANE) * 4
    table_bytes = _round_up(N, _SUB) * _round_up(D, _LANE) * 4

    fused = (table_bytes <= _FUSED_TABLE_BYTES_CAP) and (B <= _FUSED_MAX_INDICES)
    if use_fused_gather is not None:
        fused = use_fused_gather

    resident_bytes = protoT_bytes + (table_bytes if fused else 0)
    tile_b = _choose_tile_b(B, D, P, resident_bytes, fused)
    grid = _cdiv(B, tile_b)

    out_shape = jax.ShapeDtypeStruct((B, P), jnp.float32)
    compiler_params = pltpu.CompilerParams(
        dimension_semantics=("parallel",),
        vmem_limit_bytes=_vmem_limit(tile_b, D, P, resident_bytes, fused),
    )
    resident = dict(pipeline_mode=pl.Buffered(1))    # fetched once, single buffer

    if fused:
        # Pad only the tiny int32 index vector (keeps in-kernel SMEM reads in
        # range for the ragged last tile); activations/outputs are NOT padded.
        n_idx = grid * tile_b
        if n_idx != B:
            flat_idxs = jnp.pad(flat_idxs, (0, n_idx - B))
        sim = pl.pallas_call(
            _fused_gather_sim_kernel,
            out_shape=out_shape,
            grid_spec=pltpu.PrefetchScalarGridSpec(
                num_scalar_prefetch=1,
                grid=(grid,),
                in_specs=[
                    pl.BlockSpec((N, D), lambda i, idx: (0, 0), **resident),
                    pl.BlockSpec((D, P), lambda i, idx: (0, 0), **resident),
                ],
                out_specs=pl.BlockSpec((tile_b, P), lambda i, idx: (i, 0)),
                scratch_shapes=[pltpu.VMEM((tile_b, D), jnp.float32)],
            ),
            compiler_params=compiler_params,
        )(flat_idxs, embedding_table.astype(jnp.float32), protoT)
    else:
        # TODO(synk): for tables too large for VMEM with rows >= ~512 B, a manual
        # per-tile DMA row gather (memory_space=pl.ANY table) would also remove
        # this HBM round trip; below that granularity XLA's gather wins.
        o_embed = jnp.take(embedding_table, flat_idxs, axis=0).astype(jnp.float32)
        sim = pl.pallas_call(
            _sim_kernel,
            out_shape=out_shape,
            grid_spec=pltpu.PrefetchScalarGridSpec(
                num_scalar_prefetch=0,
                grid=(grid,),
                in_specs=[
                    pl.BlockSpec((tile_b, D), lambda i: (i, 0)),
                    pl.BlockSpec((D, P), lambda i: (0, 0), **resident),
                ],
                out_specs=pl.BlockSpec((tile_b, P), lambda i: (i, 0)),
            ),
            compiler_params=compiler_params,
        )(o_embed, protoT)

    # use_weight_matrix=False, k=-1 -> output is the similarity matrix itself.
    # TODO(synk): regularization-loss accumulation (reg_batch/reg_proto/ortho) is
    # training-side bookkeeping and not part of the returned forward value.
    return sim.reshape(*lead_shape, P)


if __name__ == "__main__":
    # Small, module-consistent shapes.
    n_objects = 32
    embedding_dim = 32
    n_prototypes = embedding_dim        # n_prototypes=None -> embedding_dim
    batch = 2
    n_neg_p_1 = 8

    key = jax.random.PRNGKey(0)
    k_emb, k_proto, k_idx = jax.random.split(key, 3)

    # nn.Embedding default init ~ N(0,1); prototypes = torch.randn -> N(0,1).
    embedding_table = jax.random.normal(k_emb, (n_objects, embedding_dim), jnp.float32)
    prototypes = jax.random.normal(k_proto, (n_prototypes, embedding_dim), jnp.float32)
    o_idxs = jax.random.randint(k_idx, (batch, n_neg_p_1), 0, n_objects, jnp.int32)

    # Reference in plain JAX (shifted cosine similarity).
    emb = jnp.take(embedding_table, o_idxs.reshape(-1), axis=0)
    xn = emb / jnp.maximum(jnp.linalg.norm(emb, axis=-1, keepdims=True), EPS)
    pn = prototypes / jnp.maximum(jnp.linalg.norm(prototypes, axis=-1, keepdims=True), EPS)
    ref = (1.0 + xn @ pn.T).reshape(batch, n_neg_p_1, n_prototypes)

    # Fused-gather path (table fits in VMEM).
    out_fused = prototype_embedding_forward(o_idxs, embedding_table, prototypes)
    out_fused = jax.block_until_ready(out_fused)
    assert out_fused.shape == (batch, n_neg_p_1, n_prototypes), out_fused.shape
    assert jnp.allclose(out_fused, ref, atol=1e-5, rtol=1e-5), \
        float(jnp.abs(out_fused - ref).max())

    # Fallback path (XLA gather + similarity-only kernel).
    out_fb = prototype_embedding_forward(o_idxs, embedding_table, prototypes,
                                         use_fused_gather=False)
    out_fb = jax.block_until_ready(out_fb)
    assert jnp.allclose(out_fb, ref, atol=1e-5, rtol=1e-5), \
        float(jnp.abs(out_fb - ref).max())

    print("KERNEL_OK")
</pallas_src>

<mosaic_0001>
module attributes {stable_mosaic.version = 11 : i64} {
  func.func @_fused_gather_sim_kernel(%arg0: i32, %arg1: memref<16xi32, #tpu.memory_space<smem>>, %arg2: memref<32x32xf32, #tpu.memory_space<vmem>>, %arg3: memref<32x32xf32, #tpu.memory_space<vmem>>, %arg4: memref<16x32xf32, #tpu.memory_space<vmem>>, %arg5: memref<16x32xf32, #tpu.memory_space<vmem>>) attributes {dimension_semantics = [#tpu.dimension_semantics<parallel>], iteration_bounds = array<i64: 1>, scalar_prefetch = 1 : i64, scratch_operands = 1 : i64, tpu.core_type = #tpu.core_type<tc>, window_params = [{pipeline_mode = #tpu.pipeline_mode<synchronous>, transform_indices = @transform_0, window_bounds = array<i64: 32, 32>}, {pipeline_mode = #tpu.pipeline_mode<synchronous>, transform_indices = @transform_1, window_bounds = array<i64: 32, 32>}, {transform_indices = @transform_2, window_bounds = array<i64: 16, 32>}]} {
    %c16_i32 = arith.constant 16 : i32
    %0 = arith.muli %arg0, %c16_i32 : i32
    %c0_i32 = arith.constant 0 : i32
    %c16_i32_0 = arith.constant 16 : i32
    %1 = arith.addi %c0_i32, %c16_i32_0 : i32
    %c1_i32 = arith.constant 1 : i32
    scf.for %arg6 = %c0_i32 to %1 step %c1_i32  : i32 {
      %16 = arith.addi %0, %arg6 : i32
      %17 = arith.index_cast %16 : i32 to index
      %18 = memref.load %arg1[%17] : memref<16xi32, #tpu.memory_space<smem>>
      %c0_i32_10 = arith.constant 0 : i32
      %19 = arith.maxsi %18, %c0_i32_10 : i32
      %c31_i32 = arith.constant 31 : i32
      %20 = arith.minsi %19, %c31_i32 : i32
      %21 = arith.index_cast %20 : i32 to index
      %c0_11 = arith.constant 0 : index
      %22 = vector.load %arg2[%21, %c0_11] : memref<32x32xf32, #tpu.memory_space<vmem>>, vector<1x32xf32>
      %23 = arith.index_cast %arg6 : i32 to index
      %c0_12 = arith.constant 0 : index
      %24 = vector.load %arg5[%23, %c0_12] : memref<16x32xf32, #tpu.memory_space<vmem>>, vector<1x32xf32>
      tpu.vector_store %arg5[%23, %c0_12], %22 {strides = array<i32>} : memref<16x32xf32, #tpu.memory_space<vmem>>, vector<1x32xf32>,
    }
    %c16_i32_1 = arith.constant 16 : i32
    %c0 = arith.constant 0 : index
    %c0_2 = arith.constant 0 : index
    %2 = vector.load %arg5[%c0, %c0_2] : memref<16x32xf32, #tpu.memory_space<vmem>>, vector<16x32xf32>
    %3 = arith.mulf %2, %2 : vector<16x32xf32>
    %cst = arith.constant dense<0.000000e+00> : vector<16xf32>
    %4 = vector.multi_reduction <add>, %3, %cst [1] : vector<16x32xf32> to vector<16xf32>
    %5 = vector.shape_cast %4 : vector<16xf32> to vector<16x1xf32>
    %cst_3 = arith.constant 1.000000e-16 : f32
    %6 = vector.broadcast %cst_3 : f32 to vector<16x1xf32>
    %7 = arith.maximumf %5, %6 : vector<16x1xf32>
    %8 = math.rsqrt %7 : vector<16x1xf32>
    %9 = vector.broadcast %8 : vector<16x1xf32> to vector<16x32xf32>
    %10 = arith.mulf %2, %9 : vector<16x32xf32>
    %c0_4 = arith.constant 0 : index
    %c0_5 = arith.constant 0 : index
    %11 = vector.load %arg3[%c0_4, %c0_5] : memref<32x32xf32, #tpu.memory_space<vmem>>, vector<32x32xf32>
    %cst_6 = arith.constant dense<0.000000e+00> : vector<16x32xf32>
    %12 = tpu.matmul %10, %11, %cst_6 {dimension_numbers = #tpu.dot_dimension_numbers<[1], [0], [0], [1], [0, 0, 1, 1], [], []>} : vector<16x32xf32>, vector<32x32xf32>, vector<16x32xf32> -> vector<16x32xf32>
    %cst_7 = arith.constant 1.000000e+00 : f32
    %13 = vector.broadcast %cst_7 : f32 to vector<16x32xf32>
    %14 = arith.addf %13, %12 : vector<16x32xf32>
    %c0_8 = arith.constant 0 : index
    %c0_9 = arith.constant 0 : index
    %15 = vector.load %arg4[%c0_8, %c0_9] : memref<16x32xf32, #tpu.memory_space<vmem>>, vector<16x32xf32>
    tpu.vector_store %arg4[%c0_8, %c0_9], %14 {strides = array<i32>} : memref<16x32xf32, #tpu.memory_space<vmem>>, vector<16x32xf32>,
    return
  }
  func.func @transform_0(%arg0: i32, %arg1: memref<16xi32, #tpu.memory_space<smem>>) -> (i32, i32) {
    %c0_i32 = arith.constant 0 : i32
    %c0_i32_0 = arith.constant 0 : i32
    %c0_i32_1 = arith.constant 0 : i32
    return %c0_i32, %c0_i32_0 : i32, i32
  }
  func.func @transform_1(%arg0: i32, %arg1: memref<16xi32, #tpu.memory_space<smem>>) -> (i32, i32) {
    %c0_i32 = arith.constant 0 : i32
    %c0_i32_0 = arith.constant 0 : i32
    %c0_i32_1 = arith.constant 0 : i32
    return %c0_i32, %c0_i32_0 : i32, i32
  }
  func.func @transform_2(%arg0: i32, %arg1: memref<16xi32, #tpu.memory_space<smem>>) -> (i32, i32) {
    %c0_i32 = arith.constant 0 : i32
    %c0_i32_0 = arith.constant 0 : i32
    return %arg0, %c0_i32 : i32, i32
  }
}

</mosaic_0001>

<llo_original>
// kernel: prototype_embedding_forward.1
$region0: #{prototype_embedding_forward.1}
  #allocation0 [shape = 'u32[]', space=smem, size = 0x4, offset = 0x4, fixed_abs, tag = 'smem constant byte address 0x4 - core index']
  #allocation1 [shape = 'u32[72,128]{1,0:T(1,128)}', space=vmem, size = 0x9000, scoped, tag = 'internal scratch']
  #allocation2 [shape = 'f32[16,32]{1,0:T(8,128)}', space=vmem, size = 0x2000, scoped, tag = 'scratch operand']
  #allocation3 [shape = 's32[1]{0}', space=sflag, size = 0x4, scoped, tag = 'scoped memory for prototype_embedding_forward.1']
  #allocation4 [shape = 'u8[512]{0}', space=smem, size = 0x200, scoped, tag = 'prefetched SMEM operand 0']
  %s0 = inlined_call_operand.vmem [shape: s32[16], index: 0, kind: input, shape index: {}]
  %s1 = inlined_call_operand.vmem [shape: f32[32,32], index: 1, kind: input, shape index: {}]
  %s2 = inlined_call_operand.vmem [shape: f32[32,32], index: 2, kind: input, shape index: {}]
  %s3 = inlined_call_operand.hbm [shape: f32[16,32], index: 3, kind: output, shape index: {}]
  %s4 = sld [smem:[#allocation0]]
  $region25: #{prototype_embedding_forward.1} parent=0
    _
  %s6 = ssub.s32 1, %s4
  %s7 = scalar_select 0, %s6, %s4
  %s9 = sshll.u32 %s0, 4
  %s10 = int_to_ptr.vmem [resolvable:$true] %s9
  %12 = dma.vmem_to_smem %s10, 16, [#allocation4], [#allocation3]
  %14 = dma.done [#allocation3], 16
  %15 = sfence
  $region1: #{prototype_embedding_forward.1} parent=0
    #allocation5 [shape = 'u8[8192]{0}', space=vmem, size = 0x2000, scoped, tag = 'output window, operand 0, single buffered']
    #allocation6 [shape = 's32[1]{0}', space=sflag, size = 0x4, scoped, tag = 'scoped memory for prototype_embedding_forward.1']
    %16 = vsyncpa [#allocation6], 0
    // Predicated region
    $region2: #{prototype_embedding_forward.1} parent=1 // pred_check
      _
    $region3: #{prototype_embedding_forward.1} parent=1 // pred_check_branch
      %18 = sbr.rel (0) target = $region5
    $region4: #{prototype_embedding_forward.1} parent=1 // pred_region
      _
    $region5: #{prototype_embedding_forward.1} parent=1 // pred_fallthru
      _
    // Predicated region
    $region6: #{prototype_embedding_forward.1} parent=1 // pred_check
      _
    $region7: #{prototype_embedding_forward.1} parent=1 // pred_check_branch
      %20 = sbr.rel (0) target = $region9
    $region8: #{prototype_embedding_forward.1} parent=1 // pred_region
      _
    $region9: #{prototype_embedding_forward.1} parent=1 // pred_fallthru
      _
    %s21 = smul.u32 0, 16
    loop: start=0, step=1, limit=16
    $region10: #{prototype_embedding_forward.1} parent=1 // loop_pre_header
      _
    $region11: #{prototype_embedding_forward.1} parent=1 // loop_header
      %s23 = sphi 0, %s27
      %p24 = scmp.ge.s32.totalorder %s23, 16
    $region12: #{prototype_embedding_forward.1} parent=1 // loop_header_branch
      %26 = sbr.rel (%p24) target = $region16
    $region13: #{prototype_embedding_forward.1} parent=1 // loop_body
      %s28 = sadd.s32 %s21, %s23
      %s29 = sld [smem:[#allocation4 + %s28]]
      %p30 = scmp.gt.s32.totalorder %s29, 0
      %s31 = scalar_select %p30, %s29, 0
      %p32 = scmp.lt.s32.totalorder %s31, 31
      %s33 = scalar_select %p32, %s31, 31
      %s34 = scalar_lea.vmem %s1, %s33
      %v35 = vld [vmem:[%s34] sm:$0x1]
      %s36 = scalar_lea.vmem [#allocation2], %s23
      %vm37 = vcmask 253952
      %38 = vst.msk [vmem:[%s36] sm:$0x1] %vm37, %v35
    $region14: #{prototype_embedding_forward.1} parent=1 // loop_footer
      %s27 = sadd.s32 1, %s23
    $region15: #{prototype_embedding_forward.1} parent=1 // loop_footer_branch
      %22 = sbr.rel target = $region11
    $region16: #{prototype_embedding_forward.1} parent=1 // loop_exit
      _
    %v39 = vld [vmem:[#allocation2] sm:$0xff]
    %v40 = vld [vmem:[#allocation2 + $0x8] sm:$0xff]
    %v41 = vmul.f32 %v39, %v39
    %v42 = vmul.f32 %v40, %v40
    %vm43 = vcmask 261120
    %v44 = vsel %vm43, %v41, 0.0
    %45 = vadd.xlane.f32.xlu0 %v44
    %v46 = vpop.xlane.xlu0 %45
    %v47 = vsel %vm43, %v42, 0.0
    %48 = vadd.xlane.f32.xlu0 %v47
    %v49 = vpop.xlane.xlu0 %48
    %v50 = vmax.f32 %v46, 1e-16
    %v51 = vmax.f32 %v49, 1e-16
    %v52 = vrsqrt.pop %v50
    %v53 = vmul.f32 %v52, %v50
    %v54 = vmul.f32 %v53, %v52
    %v55 = vmul.f32 0.5, %v54
    %v56 = vsub.f32 1.5, %v55
    %v57 = vmul.f32 %v52, %v56
    %vm58 = vweird.f32 %v50
    %vm59 = vweird.f32 %v52
    %vm60 = vmor %vm58, %vm59
    %v61 = vsel %vm60, %v52, %v57
    %v62 = vrsqrt.pop %v51
    %v63 = vmul.f32 %v62, %v51
    %v64 = vmul.f32 %v63, %v62
    %v65 = vmul.f32 0.5, %v64
    %v66 = vsub.f32 1.5, %v65
    %v67 = vmul.f32 %v62, %v66
    %vm68 = vweird.f32 %v51
    %vm69 = vweird.f32 %v62
    %vm70 = vmor %vm68, %vm69
    %v71 = vsel %vm70, %v62, %v67
    %v72 = vmul.f32 %v39, %v61
    %v73 = vmul.f32 %v40, %v71
    %v74 = vld [vmem:[%s2] sm:$0xff]
    %v75 = vld [vmem:[%s2 + $0x8] sm:$0xff]
    %v76 = vld [vmem:[%s2 + $0x10] sm:$0xff]
    %v77 = vld [vmem:[%s2 + $0x18] sm:$0xff]
    %v79 = vsel %vm43, %v72, 0
    %v82 = vsel %vm43, %v73, 0
    %84 = vmatpush.msra.mxu0 0.0
    %85 = vmatpush.msra.mxu0 0.0
    %86 = vmatpush.msra.mxu0 0.0
    %87 = vmatpush.msra.mxu0 0.0
    %88 = vmatpush.msra.mxu0 0.0
    %89 = vmatpush.msra.mxu0 0.0
    %90 = vmatpush.msra.mxu0 0.0
    %91 = vmatpush.msra.mxu0 0.0
    %92 = vmatpush.msra.mxu0 0.0
    %93 = vmatpush.msra.mxu0 0.0
    %94 = vmatpush.msra.mxu0 0.0
    %95 = vmatpush.msra.mxu0 0.0
    %96 = vmatpush.msra.mxu0 %v77
    %97 = vmatpush.msra.mxu0 %v76
    %98 = vmatpush.msra.mxu0 %v75
    %99 = vmatpush.msra.mxu0 %v74
    %100 = vmatmul.f32.gmra.mxu0 %v79
    %v101 = vpop.f32.mrf.mxu0
    %v102 = vadd.f32 1.0, %v101
    %103 = vmatmul.f32.gmra.mxu0 %v82
    %v104 = vpop.f32.mrf.mxu0
    %v105 = vadd.f32 1.0, %v104
    %106 = vdwg.mxu0
    %107 = vst.msk [vmem:[#allocation5] sm:$0xff] %vm43, %v102
    %108 = vst.msk [vmem:[#allocation5 + $0x8] sm:$0xff] %vm43, %v105
    // Predicated region
    $region17: #{prototype_embedding_forward.1} parent=1 // pred_check
      _
    $region18: #{prototype_embedding_forward.1} parent=1 // pred_check_branch
      %110 = sbr.rel (0) target = $region20
    $region19: #{prototype_embedding_forward.1} parent=1 // pred_region
      %112 = vsyncadd [#allocation6], 0
      %s113 = sshll.u32 [#allocation5], 4
      %s114 = int_to_ptr.vmem [resolvable:$true] %s113
      %s115 = sshll.u32 %s3, 4
      %s116 = int_to_ptr.hbm [resolvable:$true] %s115
      %121 = dma.vmem_to_hbm [thread:$0]  %s114, 256, %s116, [#allocation6], 128, 128, 8
    $region20: #{prototype_embedding_forward.1} parent=1 // pred_fallthru
      _
    // Predicated region
    $region21: #{prototype_embedding_forward.1} parent=1 // pred_check
      _
    $region22: #{prototype_embedding_forward.1} parent=1 // pred_check_branch
      %123 = sbr.rel (0) target = $region24
    $region23: #{prototype_embedding_forward.1} parent=1 // pred_region
      %125 = dma.done [#allocation6], 256
    $region24: #{prototype_embedding_forward.1} parent=1 // pred_fallthru
      _
    %126 = vsyncpa [#allocation6], 1

</llo_original>
